<compile_context>
chip_gen: v7x
topology: tpu7x:2x2x1
jax: 0.10.0
libtpu: 0.0.40
codegen_flags: <defaults>
</compile_context>

<pallas_src>
import jax
import jax.numpy as jnp
from jax.experimental import pallas as pl
from jax.experimental.pallas import tpu as pltpu


def _proj_kernel(x_ref, w_ref, b_ref, o_ref):
    # x_ref: (TMg, G*K) grouped patches     w_ref: (G*K, G*N) block-diag proj
    # b_ref: (1, G*N) bias (f32)            o_ref: (TMg, G*N)
    acc = jnp.dot(x_ref[...], w_ref[...], preferred_element_type=jnp.float32)
    o_ref[...] = (acc + b_ref[...]).astype(o_ref.dtype)


def _round_up(a, b):
    return (a + b - 1) // b * b


def patch_embed(x, weight, bias, patch_size=4, *, compute_dtype=None,
                tile_rows=2048, group=4):
    """x: (B, C, H, W).  weight: (embed_dim, C, ph, pw).  bias: (embed_dim,)."""
    ph = pw = patch_size
    B, C, H, W = x.shape
    embed_dim = weight.shape[0]
    out_dtype = x.dtype

    # Pad H/W up to a multiple of the patch size (same as F.pad in forward).
    pad_h = (-H) % ph
    pad_w = (-W) % pw
    if pad_h or pad_w:
        x = jnp.pad(x, ((0, 0), (0, 0), (0, pad_h), (0, pad_w)))
    Hpad, Wpad = H + pad_h, W + pad_w
    Hp, Wp = Hpad // ph, Wpad // pw

    # Non-overlapping patch extraction (layout glue; fuses under jit).
    # TODO(synk): fold this gather into the kernel's own BlockSpec/DMA to drop
    # the extra HBM round-trip of the (M, K) patch matrix.
    K = C * ph * pw
    M = B * Hp * Wp
    patches = x.reshape(B, C, Hp, ph, Wp, pw).transpose(0, 2, 4, 1, 3, 5)
    patches = patches.reshape(M, K)

    G = group
    # Patch rows per grid step; multiple of 8*G so grouped blocks obey the
    # (8, 128) sublane rule.  Working set per step stays ~2-3 MiB when
    # double-buffered (well inside every generation's scoped VMEM, including
    # v7x's 64 MiB chips).
    TM = min(tile_rows, _round_up(M, 8 * G))
    TM = _round_up(TM, 8 * G)
    Mp = _round_up(M, TM)
    if Mp != M:
        # Padded rows produce bias-only values and are sliced off below.
        patches = jnp.pad(patches, ((0, Mp - M), (0, 0)))

    cdt = compute_dtype if compute_dtype is not None else patches.dtype
    patches_g = patches.astype(cdt).reshape(Mp // G, G * K)   # free reshape

    # Conv weight (N, C, ph, pw) -> (K, N), then block-diagonal kron(I_G, W)
    # so G patches project to G*N lanes (lane-dense 384-wide output tile).
    w_mat = weight.reshape(embed_dim, K).T
    w_bd = jnp.kron(jnp.eye(G, dtype=w_mat.dtype), w_mat).astype(cdt)  # (G*K, G*N)
    b_g = jnp.tile(bias.astype(jnp.float32), G).reshape(1, G * embed_dim)

    Mg, Kg, Ng = Mp // G, G * K, G * embed_dim
    TMg = TM // G
    grid = (Mp // TM,)

    out_g = pl.pallas_call(
        _proj_kernel,
        out_shape=jax.ShapeDtypeStruct((Mg, Ng), out_dtype),
        grid=grid,
        in_specs=[
            pl.BlockSpec((TMg, Kg), lambda i: (i, 0)),
            pl.BlockSpec((Kg, Ng), lambda i: (0, 0)),   # weight: VMEM-resident
            pl.BlockSpec((1, Ng), lambda i: (0, 0)),    # bias:   VMEM-resident
        ],
        out_specs=pl.BlockSpec((TMg, Ng), lambda i: (i, 0)),
        compiler_params=pltpu.CompilerParams(
            dimension_semantics=("parallel",),          # shard M across TCs (v7x)
        ),
    )(patches_g, w_bd, b_g)

    # (Mg, G*N) -> (Mp, N) is a free row-major reshape; drop padded rows.
    out = out_g.reshape(Mp, embed_dim)[:M].reshape(B, Hp * Wp, embed_dim)
    # norm_layer=None in the reference module -> Identity.
    return out, Hp, Wp


def _reference(x, weight, bias, patch_size):
    """Plain-JAX reference of the PyTorch forward (pad -> conv -> flatten)."""
    ph = pw = patch_size
    B, C, H, W = x.shape
    embed_dim = weight.shape[0]
    pad_h = (-H) % ph
    pad_w = (-W) % pw
    if pad_h or pad_w:
        x = jnp.pad(x, ((0, 0), (0, 0), (0, pad_h), (0, pad_w)))
    y = jax.lax.conv_general_dilated(
        x, weight, window_strides=(ph, pw), padding="VALID",
        dimension_numbers=("NCHW", "OIHW", "NCHW"))
    y = y + bias.reshape(1, embed_dim, 1, 1)
    Hp, Wp = y.shape[2], y.shape[3]
    y = y.reshape(B, embed_dim, Hp * Wp).transpose(0, 2, 1)
    return y, Hp, Wp


if __name__ == "__main__":
    patch_size = 4
    in_c = 3
    embed_dim = 96

    key = jax.random.PRNGKey(0)
    kx, kw, kb, kx2 = jax.random.split(key, 4)
    weight = jax.random.normal(kw, (embed_dim, in_c, patch_size, patch_size),
                               dtype=jnp.float32) * 0.02
    bias = jax.random.normal(kb, (embed_dim,), dtype=jnp.float32) * 0.02

    # Case 1: H, W divisible by the patch size.
    B, H, W = 2, 16, 16
    x = jax.random.normal(kx, (B, in_c, H, W), dtype=jnp.float32)
    out, Hp, Wp = patch_embed(x, weight, bias, patch_size=patch_size)
    out = jax.block_until_ready(out)
    ref, Hr, Wr = _reference(x, weight, bias, patch_size)
    assert (Hp, Wp) == (Hr, Wr)
    assert out.shape == (B, Hp * Wp, embed_dim)
    assert jnp.allclose(out, ref, atol=1e-4, rtol=1e-4)

    # Case 2: H, W NOT divisible by the patch size (exercises the pad path).
    B2, H2, W2 = 2, 18, 18
    x2 = jax.random.normal(kx2, (B2, in_c, H2, W2), dtype=jnp.float32)
    out2, Hp2, Wp2 = patch_embed(x2, weight, bias, patch_size=patch_size)
    out2 = jax.block_until_ready(out2)
    ref2, Hr2, Wr2 = _reference(x2, weight, bias, patch_size)
    assert (Hp2, Wp2) == (Hr2, Wr2)
    assert out2.shape == (B2, Hp2 * Wp2, embed_dim)
    assert jnp.allclose(out2, ref2, atol=1e-4, rtol=1e-4)

    print("KERNEL_OK")
</pallas_src>

<mosaic_0001>
module attributes {stable_mosaic.version = 11 : i64} {
  func.func @_proj_kernel(%arg0: i32, %arg1: memref<8x192xf32, #tpu.memory_space<vmem>>, %arg2: memref<192x384xf32, #tpu.memory_space<vmem>>, %arg3: memref<1x384xf32, #tpu.memory_space<vmem>>, %arg4: memref<8x384xf32, #tpu.memory_space<vmem>>) attributes {dimension_semantics = [#tpu.dimension_semantics<parallel>], iteration_bounds = array<i64: 1>, scalar_prefetch = 0 : i64, scratch_operands = 0 : i64, tpu.core_type = #tpu.core_type<tc>, window_params = [{transform_indices = @transform_0, window_bounds = array<i64: 8, 192>}, {pipeline_mode = #tpu.pipeline_mode<synchronous>, transform_indices = @transform_1, window_bounds = array<i64: 192, 384>}, {pipeline_mode = #tpu.pipeline_mode<synchronous>, transform_indices = @transform_2, window_bounds = array<i64: 1, 384>}, {transform_indices = @transform_3, window_bounds = array<i64: 8, 384>}]} {
    %c0 = arith.constant 0 : index
    %c0_0 = arith.constant 0 : index
    %0 = vector.load %arg1[%c0, %c0_0] : memref<8x192xf32, #tpu.memory_space<vmem>>, vector<8x192xf32>
    %c0_1 = arith.constant 0 : index
    %c0_2 = arith.constant 0 : index
    %1 = vector.load %arg2[%c0_1, %c0_2] : memref<192x384xf32, #tpu.memory_space<vmem>>, vector<192x384xf32>
    %cst = arith.constant dense<0.000000e+00> : vector<8x384xf32>
    %2 = tpu.matmul %0, %1, %cst {dimension_numbers = #tpu.dot_dimension_numbers<[1], [0], [0], [1], [0, 0, 1, 1], [], []>} : vector<8x192xf32>, vector<192x384xf32>, vector<8x384xf32> -> vector<8x384xf32>
    %c0_3 = arith.constant 0 : index
    %c0_4 = arith.constant 0 : index
    %3 = vector.load %arg3[%c0_3, %c0_4] : memref<1x384xf32, #tpu.memory_space<vmem>>, vector<1x384xf32>
    %4 = vector.broadcast %3 : vector<1x384xf32> to vector<8x384xf32>
    %5 = arith.addf %2, %4 : vector<8x384xf32>
    %c0_5 = arith.constant 0 : index
    %c0_6 = arith.constant 0 : index
    %6 = vector.load %arg4[%c0_5, %c0_6] : memref<8x384xf32, #tpu.memory_space<vmem>>, vector<8x384xf32>
    tpu.vector_store %arg4[%c0_5, %c0_6], %5 {strides = array<i32>} : memref<8x384xf32, #tpu.memory_space<vmem>>, vector<8x384xf32>,
    return
  }
  func.func @transform_0(%arg0: i32) -> (i32, i32) {
    %c0_i32 = arith.constant 0 : i32
    %c0_i32_0 = arith.constant 0 : i32
    return %arg0, %c0_i32 : i32, i32
  }
  func.func @transform_1(%arg0: i32) -> (i32, i32) {
    %c0_i32 = arith.constant 0 : i32
    %c0_i32_0 = arith.constant 0 : i32
    %c0_i32_1 = arith.constant 0 : i32
    return %c0_i32, %c0_i32_0 : i32, i32
  }
  func.func @transform_2(%arg0: i32) -> (i32, i32) {
    %c0_i32 = arith.constant 0 : i32
    %c0_i32_0 = arith.constant 0 : i32
    %c0_i32_1 = arith.constant 0 : i32
    return %c0_i32, %c0_i32_0 : i32, i32
  }
  func.func @transform_3(%arg0: i32) -> (i32, i32) {
    %c0_i32 = arith.constant 0 : i32
    %c0_i32_0 = arith.constant 0 : i32
    return %arg0, %c0_i32 : i32, i32
  }
}

</mosaic_0001>

<llo_original>
// kernel: tpu_custom_call.1
$region0: #{tpu_custom_call.1}
  #allocation0 [shape = 'u32[]', space=smem, size = 0x4, offset = 0x4, fixed_abs, tag = 'smem constant byte address 0x4 - core index']
  #allocation1 [shape = 'u32[144,128]{1,0:T(1,128)}', space=vmem, size = 0x12000, scoped, tag = 'internal scratch']
  %s0 = inlined_call_operand.hbm [shape: f32[8,192], index: 0, kind: input, shape index: {}]
  %s1 = inlined_call_operand.hbm [shape: f32[192,384], index: 1, kind: input, shape index: {}]
  %s2 = inlined_call_operand.vmem [shape: f32[1,384], index: 2, kind: input, shape index: {}]
  %s3 = inlined_call_operand.hbm [shape: f32[8,384], index: 3, kind: output, shape index: {}]
  %s4 = sld [smem:[#allocation0]]
  $region30: #{tpu_custom_call.1} parent=0
    _
  %s6 = ssub.s32 1, %s4
  %s7 = scalar_select 0, %s6, %s4
  $region1: #{tpu_custom_call.1} parent=0
    #allocation2 [shape = 'u8[8192]{0}', space=vmem, size = 0x2000, scoped, tag = 'input window, operand 0, single buffered']
    #allocation3 [shape = 's32[1]{0}', space=sflag, size = 0x4, scoped, tag = 'scoped memory for tpu_custom_call.1']
    #allocation4 [shape = 's32[1]{0}', space=sflag, size = 0x4, scoped, tag = 'scoped memory for tpu_custom_call.1']
    #allocation5 [shape = 'u8[294912]{0}', space=vmem, size = 0x48000, scoped, tag = 'input window, operand 1, single buffered']
    #allocation6 [shape = 's32[1]{0}', space=sflag, size = 0x4, scoped, tag = 'scoped memory for tpu_custom_call.1']
    #allocation7 [shape = 'u8[12288]{0}', space=vmem, size = 0x3000, scoped, tag = 'output window, operand 0, single buffered']
    %8 = vsyncpa [#allocation3], 0
    %9 = vsyncpa [#allocation6], 0
    %10 = vsyncpa [#allocation4], 0
    // Predicated region
    $region2: #{tpu_custom_call.1} parent=1 // pred_check
      _
    $region3: #{tpu_custom_call.1} parent=1 // pred_check_branch
      %12 = sbr.rel (0) target = $region5
    $region4: #{tpu_custom_call.1} parent=1 // pred_region
      %s14 = ssub.s32 256, 256
      %15 = vsyncadd [#allocation3], %s14
      %s17 = sshll.u32 [#allocation2], 4
      %s18 = int_to_ptr.vmem [resolvable:$true] %s17
      %20 = dma.hbm_to_vmem [thread:$0]  %s0, 256, %s18, [#allocation3]
    $region5: #{tpu_custom_call.1} parent=1 // pred_fallthru
      _
    // Predicated region
    $region6: #{tpu_custom_call.1} parent=1 // pred_check
      _
    $region7: #{tpu_custom_call.1} parent=1 // pred_check_branch
      %22 = sbr.rel (0) target = $region9
    $region8: #{tpu_custom_call.1} parent=1 // pred_region
      %s24 = ssub.s32 9216, 9216
      %25 = vsyncadd [#allocation6], %s24
      %s26 = sshll.u32 [#allocation5], 4
      %s27 = int_to_ptr.vmem [resolvable:$true] %s26
      %32 = dma.hbm_to_vmem [thread:$0]  %s1, 9216, %s27, [#allocation6], 384, 384, 24
    $region9: #{tpu_custom_call.1} parent=1 // pred_fallthru
      _
    // Predicated region
    $region10: #{tpu_custom_call.1} parent=1 // pred_check
      _
    $region11: #{tpu_custom_call.1} parent=1 // pred_check_branch
      %34 = sbr.rel (0) target = $region13
    $region12: #{tpu_custom_call.1} parent=1 // pred_region
      _
    $region13: #{tpu_custom_call.1} parent=1 // pred_fallthru
      _
    // Predicated region
    $region14: #{tpu_custom_call.1} parent=1 // pred_check
      _
    $region15: #{tpu_custom_call.1} parent=1 // pred_check_branch
      %36 = sbr.rel (0) target = $region17
    $region16: #{tpu_custom_call.1} parent=1 // pred_region
      %37 = dma.done [#allocation3], 256
    $region17: #{tpu_custom_call.1} parent=1 // pred_fallthru
      _
    // Predicated region
    $region18: #{tpu_custom_call.1} parent=1 // pred_check
      _
    $region19: #{tpu_custom_call.1} parent=1 // pred_check_branch
      %39 = sbr.rel (0) target = $region21
    $region20: #{tpu_custom_call.1} parent=1 // pred_region
      %40 = dma.done [#allocation6], 9216
    $region21: #{tpu_custom_call.1} parent=1 // pred_fallthru
      _
    %v41 = vld [vmem:[#allocation2] sm:$0xff]
    %v42 = vld [vmem:[#allocation2 + $0x8] sm:$0xff]
    %v43 = vld [vmem:[#allocation5] sm:$0xff]
    %v44 = vld [vmem:[#allocation5 + $0x8] sm:$0xff]
    %v45 = vld [vmem:[#allocation5 + $0x10] sm:$0xff]
    %v46 = vld [vmem:[#allocation5 + $0x18] sm:$0xff]
    %v47 = vld [vmem:[#allocation5 + $0x20] sm:$0xff]
    %v48 = vld [vmem:[#allocation5 + $0x28] sm:$0xff]
    %v49 = vld [vmem:[#allocation5 + $0x30] sm:$0xff]
    %v50 = vld [vmem:[#allocation5 + $0x38] sm:$0xff]
    %v51 = vld [vmem:[#allocation5 + $0x40] sm:$0xff]
    %v52 = vld [vmem:[#allocation5 + $0x48] sm:$0xff]
    %v53 = vld [vmem:[#allocation5 + $0x50] sm:$0xff]
    %v54 = vld [vmem:[#allocation5 + $0x58] sm:$0xff]
    %v55 = vld [vmem:[#allocation5 + $0x60] sm:$0xff]
    %v56 = vld [vmem:[#allocation5 + $0x68] sm:$0xff]
    %v57 = vld [vmem:[#allocation5 + $0x70] sm:$0xff]
    %v58 = vld [vmem:[#allocation5 + $0x78] sm:$0xff]
    %v59 = vld [vmem:[#allocation5 + $0x80] sm:$0xff]
    %v60 = vld [vmem:[#allocation5 + $0x88] sm:$0xff]
    %v61 = vld [vmem:[#allocation5 + $0x90] sm:$0xff]
    %v62 = vld [vmem:[#allocation5 + $0x98] sm:$0xff]
    %v63 = vld [vmem:[#allocation5 + $0xa0] sm:$0xff]
    %v64 = vld [vmem:[#allocation5 + $0xa8] sm:$0xff]
    %v65 = vld [vmem:[#allocation5 + $0xb0] sm:$0xff]
    %v66 = vld [vmem:[#allocation5 + $0xb8] sm:$0xff]
    %v67 = vld [vmem:[#allocation5 + $0xc0] sm:$0xff]
    %v68 = vld [vmem:[#allocation5 + $0xc8] sm:$0xff]
    %v69 = vld [vmem:[#allocation5 + $0xd0] sm:$0xff]
    %v70 = vld [vmem:[#allocation5 + $0xd8] sm:$0xff]
    %v71 = vld [vmem:[#allocation5 + $0xe0] sm:$0xff]
    %v72 = vld [vmem:[#allocation5 + $0xe8] sm:$0xff]
    %v73 = vld [vmem:[#allocation5 + $0xf0] sm:$0xff]
    %v74 = vld [vmem:[#allocation5 + $0xf8] sm:$0xff]
    %v75 = vld [vmem:[#allocation5 + $0x100] sm:$0xff]
    %v76 = vld [vmem:[#allocation5 + $0x108] sm:$0xff]
    %v77 = vld [vmem:[#allocation5 + $0x110] sm:$0xff]
    %v78 = vld [vmem:[#allocation5 + $0x118] sm:$0xff]
    %v79 = vld [vmem:[#allocation5 + $0x120] sm:$0xff]
    %v80 = vld [vmem:[#allocation5 + $0x128] sm:$0xff]
    %v81 = vld [vmem:[#allocation5 + $0x130] sm:$0xff]
    %v82 = vld [vmem:[#allocation5 + $0x138] sm:$0xff]
    %v83 = vld [vmem:[#allocation5 + $0x140] sm:$0xff]
    %v84 = vld [vmem:[#allocation5 + $0x148] sm:$0xff]
    %v85 = vld [vmem:[#allocation5 + $0x150] sm:$0xff]
    %v86 = vld [vmem:[#allocation5 + $0x158] sm:$0xff]
    %v87 = vld [vmem:[#allocation5 + $0x160] sm:$0xff]
    %v88 = vld [vmem:[#allocation5 + $0x168] sm:$0xff]
    %v89 = vld [vmem:[#allocation5 + $0x170] sm:$0xff]
    %v90 = vld [vmem:[#allocation5 + $0x178] sm:$0xff]
    %v91 = vld [vmem:[#allocation5 + $0x180] sm:$0xff]
    %v92 = vld [vmem:[#allocation5 + $0x188] sm:$0xff]
    %v93 = vld [vmem:[#allocation5 + $0x190] sm:$0xff]
    %v94 = vld [vmem:[#allocation5 + $0x198] sm:$0xff]
    %v95 = vld [vmem:[#allocation5 + $0x1a0] sm:$0xff]
    %v96 = vld [vmem:[#allocation5 + $0x1a8] sm:$0xff]
    %v97 = vld [vmem:[#allocation5 + $0x1b0] sm:$0xff]
    %v98 = vld [vmem:[#allocation5 + $0x1b8] sm:$0xff]
    %v99 = vld [vmem:[#allocation5 + $0x1c0] sm:$0xff]
    %v100 = vld [vmem:[#allocation5 + $0x1c8] sm:$0xff]
    %v101 = vld [vmem:[#allocation5 + $0x1d0] sm:$0xff]
    %v102 = vld [vmem:[#allocation5 + $0x1d8] sm:$0xff]
    %v103 = vld [vmem:[#allocation5 + $0x1e0] sm:$0xff]
    %v104 = vld [vmem:[#allocation5 + $0x1e8] sm:$0xff]
    %v105 = vld [vmem:[#allocation5 + $0x1f0] sm:$0xff]
    %v106 = vld [vmem:[#allocation5 + $0x1f8] sm:$0xff]
    %v107 = vld [vmem:[#allocation5 + $0x200] sm:$0xff]
    %v108 = vld [vmem:[#allocation5 + $0x208] sm:$0xff]
    %v109 = vld [vmem:[#allocation5 + $0x210] sm:$0xff]
    %v110 = vld [vmem:[#allocation5 + $0x218] sm:$0xff]
    %v111 = vld [vmem:[#allocation5 + $0x220] sm:$0xff]
    %v112 = vld [vmem:[#allocation5 + $0x228] sm:$0xff]
    %v113 = vld [vmem:[#allocation5 + $0x230] sm:$0xff]
    %v114 = vld [vmem:[#allocation5 + $0x238] sm:$0xff]
    %v115 = vld [vmem:[%s2] sm:$0x7]
    %v117 = vlaneseq
    %v118 = vshrl.u32 %v117, 7
    %v119 = vsub.s32 0, %v118
    %v120 = vrot.slane %v115, %v119
    %v121 = vlaneseq
    %v122 = vshrl.u32 %v121, 7
    %v123 = vsub.s32 1, %v122
    %v124 = vrot.slane %v115, %v123
    %v125 = vlaneseq
    %v126 = vshrl.u32 %v125, 7
    %v127 = vsub.s32 2, %v126
    %v128 = vrot.slane %v115, %v127
    %vm132 = vcmask 523264
    %v134 = vsel %vm132, %v42, 0
    %136 = vmatprep.subr.mxu0 %v44
    %137 = vmatpush1.msra.mxu0 %v43
    %138 = vmatprep.subr.mxu0 %v47
    %139 = vmatpush1.msra.mxu0 %v46
    %140 = vmatprep.subr.mxu0 %v50
    %141 = vmatpush1.msra.mxu0 %v49
    %142 = vmatprep.subr.mxu0 %v53
    %143 = vmatpush1.msra.mxu0 %v52
    %144 = vmatprep.subr.mxu0 %v56
    %145 = vmatpush1.msra.mxu0 %v55
    %146 = vmatprep.subr.mxu0 %v59
    %147 = vmatpush1.msra.mxu0 %v58
    %148 = vmatprep.subr.mxu0 %v62
    %149 = vmatpush1.msra.mxu0 %v61
    %150 = vmatprep.subr.mxu0 %v65
    %151 = vmatpush1.msra.mxu0 %v64
    %152 = vmatprep.subr.mxu0 %v68
    %153 = vmatpush1.msra.mxu0 %v67
    %154 = vmatprep.subr.mxu0 %v71
    %155 = vmatpush1.msra.mxu0 %v70
    %156 = vmatprep.subr.mxu0 %v74
    %157 = vmatpush1.msra.mxu0 %v73
    %158 = vmatprep.subr.mxu0 %v77
    %159 = vmatpush1.msra.mxu0 %v76
    %160 = vmatprep.subr.mxu0 %v80
    %161 = vmatpush1.msra.mxu0 %v79
    %162 = vmatprep.subr.mxu0 %v83
    %163 = vmatpush1.msra.mxu0 %v82
    %164 = vmatprep.subr.mxu0 %v86
    %165 = vmatpush1.msra.mxu0 %v85
    %166 = vmatprep.subr.mxu0 %v89
    %167 = vmatpush1.msra.mxu0 %v88
    %168 = vmatprep.subr.mxu0 %v92
    %169 = vmatpush1.msra.mxu0 %v91
    %170 = vmatprep.subr.mxu0 %v95
    %171 = vmatpush1.msra.mxu0 %v94
    %172 = vmatprep.subr.mxu0 %v98
    %173 = vmatpush1.msra.mxu0 %v97
    %174 = vmatprep.subr.mxu0 %v101
    %175 = vmatpush1.msra.mxu0 %v100
    %176 = vmatprep.subr.mxu0 %v104
    %177 = vmatpush1.msra.mxu0 %v103
    %178 = vmatprep.subr.mxu0 %v107
    %179 = vmatpush1.msra.mxu0 %v106
    %180 = vmatprep.subr.mxu0 %v110
    %181 = vmatpush1.msra.mxu0 %v109
    %182 = vmatprep.subr.mxu0 %v113
    %183 = vmatpush1.msra.mxu0 %v112
    %184 = vmatprep.subr.mxu0 0.0
    %185 = vmatpush1.msra.mxu0 0.0
    %186 = vmatprep.subr.mxu0 0.0
    %187 = vmatpush1.msra.mxu0 0.0
    %188 = vmatprep.subr.mxu0 0.0
    %189 = vmatpush1.msra.mxu0 0.0
    %190 = vmatprep.subr.mxu0 0.0
    %191 = vmatpush1.msra.mxu0 0.0
    %192 = vmatprep.subr.mxu0 0.0
    %193 = vmatpush1.msra.mxu0 0.0
    %194 = vmatprep.subr.mxu0 0.0
    %195 = vmatpush1.msra.mxu0 0.0
    %196 = vmatprep.subr.mxu0 0.0
    %197 = vmatpush1.msra.mxu0 0.0
    %198 = vmatprep.subr.mxu0 0.0
    %199 = vmatpush1.msra.mxu0 0.0
    %200 = vmatprep.mubr.f32.mxu0 %v134
    %201 = vmatmul.mubr.f32.gmra.mrb[0].mxu0 %v41
    %v202 = vpop.f32.mrb[0].mxu0
    %v203 = vadd.f32 %v120, %v202
    %v204 = vpop.f32.mrb[0].mxu0
    %v205 = vadd.f32 %v124, %v204
    %206 = vdwg.mxu0
    %207 = vmatprep.subr.mxu0 0.0
    %208 = vmatpush1.msra.mxu0 %v45
    %209 = vmatprep.subr.mxu0 0.0
    %210 = vmatpush1.msra.mxu0 %v48
    %211 = vmatprep.subr.mxu0 0.0
    %212 = vmatpush1.msra.mxu0 %v51
    %213 = vmatprep.subr.mxu0 0.0
    %214 = vmatpush1.msra.mxu0 %v54
    %215 = vmatprep.subr.mxu0 0.0
    %216 = vmatpush1.msra.mxu0 %v57
    %217 = vmatprep.subr.mxu0 0.0
    %218 = vmatpush1.msra.mxu0 %v60
    %219 = vmatprep.subr.mxu0 0.0
    %220 = vmatpush1.msra.mxu0 %v63
    %221 = vmatprep.subr.mxu0 0.0
    %222 = vmatpush1.msra.mxu0 %v66
    %223 = vmatprep.subr.mxu0 0.0
    %224 = vmatpush1.msra.mxu0 %v69
    %225 = vmatprep.subr.mxu0 0.0
    %226 = vmatpush1.msra.mxu0 %v72
    %227 = vmatprep.subr.mxu0 0.0
    %228 = vmatpush1.msra.mxu0 %v75
    %229 = vmatprep.subr.mxu0 0.0
    %230 = vmatpush1.msra.mxu0 %v78
    %231 = vmatprep.subr.mxu0 0.0
    %232 = vmatpush1.msra.mxu0 %v81
    %233 = vmatprep.subr.mxu0 0.0
    %234 = vmatpush1.msra.mxu0 %v84
    %235 = vmatprep.subr.mxu0 0.0
    %236 = vmatpush1.msra.mxu0 %v87
    %237 = vmatprep.subr.mxu0 0.0
    %238 = vmatpush1.msra.mxu0 %v90
    %239 = vmatprep.subr.mxu0 0.0
    %240 = vmatpush1.msra.mxu0 %v93
    %241 = vmatprep.subr.mxu0 0.0
    %242 = vmatpush1.msra.mxu0 %v96
    %243 = vmatprep.subr.mxu0 0.0
    %244 = vmatpush1.msra.mxu0 %v99
    %245 = vmatprep.subr.mxu0 0.0
    %246 = vmatpush1.msra.mxu0 %v102
    %247 = vmatprep.subr.mxu0 0.0
    %248 = vmatpush1.msra.mxu0 %v105
    %249 = vmatprep.subr.mxu0 0.0
    %250 = vmatpush1.msra.mxu0 %v108
    %251 = vmatprep.subr.mxu0 0.0
    %252 = vmatpush1.msra.mxu0 %v111
    %253 = vmatprep.subr.mxu0 0.0
    %254 = vmatpush1.msra.mxu0 %v114
    %255 = vmatprep.subr.mxu0 0.0
    %256 = vmatpush1.msra.mxu0 0.0
    %257 = vmatprep.subr.mxu0 0.0
    %258 = vmatpush1.msra.mxu0 0.0
    %259 = vmatprep.subr.mxu0 0.0
    %260 = vmatpush1.msra.mxu0 0.0
    %261 = vmatprep.subr.mxu0 0.0
    %262 = vmatpush1.msra.mxu0 0.0
    %263 = vmatprep.subr.mxu0 0.0
    %264 = vmatpush1.msra.mxu0 0.0
    %265 = vmatprep.subr.mxu0 0.0
    %266 = vmatpush1.msra.mxu0 0.0
    %267 = vmatprep.subr.mxu0 0.0
    %268 = vmatpush1.msra.mxu0 0.0
    %269 = vmatprep.subr.mxu0 0.0
    %270 = vmatpush1.msra.mxu0 0.0
    %271 = vmatprep.mubr.f32.mxu0 %v134
    %272 = vmatmul.mubr.f32.gmra.mrb[0].mxu0 %v41
    %v273 = vpop.f32.mrb[0].mxu0
    %v274 = vadd.f32 %v128, %v273
    %v275 = vpop.f32.mrb[0].mxu0
    %276 = vdwg.mxu0
    %277 = vst [vmem:[#allocation7] sm:$0xff] %v203
    %278 = vst [vmem:[#allocation7 + $0x8] sm:$0xff] %v205
    %279 = vst [vmem:[#allocation7 + $0x10] sm:$0xff] %v274
    // Predicated region
    $region22: #{tpu_custom_call.1} parent=1 // pred_check
      _
    $region23: #{tpu_custom_call.1} parent=1 // pred_check_branch
      %281 = sbr.rel (0) target = $region25
    $region24: #{tpu_custom_call.1} parent=1 // pred_region
      %s283 = ssub.s32 384, 384
      %284 = vsyncadd [#allocation4], %s283
      %s286 = sshll.u32 [#allocation7], 4
      %s287 = int_to_ptr.vmem [resolvable:$true] %s286
      %289 = dma.vmem_to_hbm [thread:$0]  %s287, 384, %s3, [#allocation4]
    $region25: #{tpu_custom_call.1} parent=1 // pred_fallthru
      _
    // Predicated region
    $region26: #{tpu_custom_call.1} parent=1 // pred_check
      _
    $region27: #{tpu_custom_call.1} parent=1 // pred_check_branch
      %291 = sbr.rel (0) target = $region29
    $region28: #{tpu_custom_call.1} parent=1 // pred_region
      %292 = dma.done [#allocation4], 384
    $region29: #{tpu_custom_call.1} parent=1 // pred_fallthru
      _
    %293 = vsyncpa [#allocation3], 1
    %294 = vsyncpa [#allocation6], 1
    %295 = vsyncpa [#allocation4], 1

</llo_original>
